<compile_context>
chip_gen: v5e
topology: v5e:2x2
jax: 0.10.0
libtpu: 0.0.40
codegen_flags: <defaults>
</compile_context>

<pallas_src>
import jax
import jax.numpy as jnp
from jax.experimental import pallas as pl
from jax.experimental.pallas import tpu as pltpu

_HIGHEST = jax.lax.Precision.HIGHEST
_TB_MAX = 512  # batch rows per tile on the grid path (multiple of 8 and 128)


def _actor_kernel(bound_ref, x_ref, w1_ref, b1_ref, wht_ref, bht_ref, out_ref):
    """One batch tile.

    bound_ref : (1, 1)   f32  SMEM scalar
    x_ref     : (TB, K)  f32  batch rows on sublanes
    w1_ref    : (K, H)   f32  (VMEM-resident across grid steps)
    b1_ref    : (1, H)   f32
    wht_ref   : (2, H)   f32  fused heads, transposed: row 0 = mu, row 1 = sigma
    bht_ref   : (2, 1)   f32
    out_ref   : (2, TB)  f32  lane-dense output: row 0 = mu, row 1 = sigma
    """
    # ---- Layer 1 on the MXU: h = relu(x @ W1 + b1) -> (TB, H) ----
    h = jnp.dot(x_ref[...], w1_ref[...],
                preferred_element_type=jnp.float32, precision=_HIGHEST)
    h = jnp.maximum(h + b1_ref[...], 0.0)   # extra F.relu in forward is a no-op

    # ---- Fused heads, transposed so batch lands on lanes (lane-dense out) ----
    #   zt = W_heads^T @ h^T + b_heads^T -> (2, TB)
    zt = jnp.dot(wht_ref[...], h.T,
                 preferred_element_type=jnp.float32, precision=_HIGHEST)
    zt = zt + bht_ref[...]

    bound = bound_ref[0, 0]
    z_mu = zt[0:1, :]
    z_sg = zt[1:2, :]
    out_ref[0:1, :] = bound * jnp.tanh(z_mu)
    # Numerically stable softplus: max(z,0) + log(1 + exp(-|z|))
    out_ref[1:2, :] = (jnp.maximum(z_sg, 0.0)
                       + jnp.log(1.0 + jnp.exp(-jnp.abs(z_sg))))


def fuse_head_params(params):
    """Build the fused / transposed head params ONCE (hoisted out of forward)."""
    w1, b1, wmu, bmu, wsig, bsig = params
    wht = jnp.concatenate([wmu.T, wsig.T], axis=0)   # (2, H): row 0 mu, row 1 sigma
    bht = jnp.concatenate([bmu, bsig], axis=0)       # (2, 1)
    return (w1, b1, wht, bht)


def actor_net_forward(x, fused_params, bound):
    """x: (B, n_states) f32.  Returns (mu, sigma), each (B, 1) f32."""
    w1, b1, wht, bht = fused_params
    B, n_states = x.shape
    H = w1.shape[1]

    if B <= _TB_MAX:
        tb = B                       # single untiled block
        grid = (1,)
    else:
        tb = _TB_MAX                 # lane-dense (2, 512) output blocks
        grid = (pl.cdiv(B, tb),)

    bound_arr = jnp.asarray(bound, jnp.float32).reshape(1, 1)

    flops = 2 * B * (n_states * H + H * 2)
    # tanh + exp + log, each on one (1, B) row
    transcendentals = 3 * B
    bytes_accessed = 4 * (x.size + w1.size + b1.size + wht.size + bht.size
                          + 2 * B + 1)

    out = pl.pallas_call(
        _actor_kernel,
        out_shape=jax.ShapeDtypeStruct((2, B), jnp.float32),
        grid=grid,
        in_specs=[
            pl.BlockSpec(memory_space=pltpu.MemorySpace.SMEM),   # bound scalar
            pl.BlockSpec((tb, n_states), lambda i: (i, 0)),      # x batch tile
            pl.BlockSpec((n_states, H), lambda i: (0, 0)),       # W1 (resident)
            pl.BlockSpec((1, H), lambda i: (0, 0)),              # b1 (resident)
            pl.BlockSpec((2, H), lambda i: (0, 0)),              # fused heads W^T
            pl.BlockSpec((2, 1), lambda i: (0, 0)),              # fused heads b^T
        ],
        out_specs=pl.BlockSpec((2, tb), lambda i: (0, i)),
        compiler_params=pltpu.CompilerParams(
            dimension_semantics=("parallel",)),
        cost_estimate=pl.CostEstimate(
            flops=flops, transcendentals=transcendentals,
            bytes_accessed=bytes_accessed),
    )(bound_arr, x, w1, b1, wht, bht)

    mu = out[0].reshape(B, 1)
    sigma = out[1].reshape(B, 1)
    return mu, sigma


def init_params(key, n_states, hidden=128):
    """Deterministic parameter init (PyTorch-Linear-like uniform fan-in init)."""
    ks = jax.random.split(key, 6)

    def lin(kw, kb, fan_in, fan_out):
        lim = 1.0 / jnp.sqrt(jnp.float32(fan_in))
        w = jax.random.uniform(kw, (fan_in, fan_out), jnp.float32, -lim, lim)
        b = jax.random.uniform(kb, (1, fan_out), jnp.float32, -lim, lim)
        return w, b

    w1, b1 = lin(ks[0], ks[1], n_states, hidden)
    wmu, bmu = lin(ks[2], ks[3], hidden, 1)
    wsig, bsig = lin(ks[4], ks[5], hidden, 1)
    return (w1, b1, wmu, bmu, wsig, bsig)


def reference_forward(x, params, bound):
    w1, b1, wmu, bmu, wsig, bsig = params
    h = jax.nn.relu(jax.nn.relu(jnp.dot(x, w1, precision=_HIGHEST) + b1))
    mu = bound * jnp.tanh(jnp.dot(h, wmu, precision=_HIGHEST) + bmu)
    sigma = jax.nn.softplus(jnp.dot(h, wsig, precision=_HIGHEST) + bsig)
    return mu, sigma


if __name__ == "__main__":
    n_states = 4
    bound = 2.0
    batch = 8

    key = jax.random.PRNGKey(0)
    k_params, k_x, k_x2 = jax.random.split(key, 3)
    params = init_params(k_params, n_states)
    fused = fuse_head_params(params)   # hoisted: built once, reused every call
    jax.block_until_ready(fused)

    # --- small batch (RL rollout case): single-block path ---
    x = jax.random.normal(k_x, (batch, n_states), dtype=jnp.float32)
    mu, sigma = actor_net_forward(x, fused, bound)
    jax.block_until_ready((mu, sigma))

    mu_ref, sigma_ref = reference_forward(x, params, bound)
    assert mu.shape == (batch, 1) and sigma.shape == (batch, 1)
    assert jnp.allclose(mu, mu_ref, atol=2e-3, rtol=2e-3)
    assert jnp.allclose(sigma, sigma_ref, atol=2e-3, rtol=2e-3)

    # --- large batch (vectorized envs): exercises the 1-D batch grid ---
    big_batch = 1024
    xb = jax.random.normal(k_x2, (big_batch, n_states), dtype=jnp.float32)
    mu_b, sigma_b = actor_net_forward(xb, fused, bound)
    jax.block_until_ready((mu_b, sigma_b))

    mu_b_ref, sigma_b_ref = reference_forward(xb, params, bound)
    assert mu_b.shape == (big_batch, 1) and sigma_b.shape == (big_batch, 1)
    assert jnp.allclose(mu_b, mu_b_ref, atol=2e-3, rtol=2e-3)
    assert jnp.allclose(sigma_b, sigma_b_ref, atol=2e-3, rtol=2e-3)

    print("KERNEL_OK")
</pallas_src>

<mosaic_0001>
module attributes {stable_mosaic.version = 11 : i64} {
  func.func @_actor_kernel(%arg0: i32, %arg1: memref<1x1xf32, #tpu.memory_space<smem>>, %arg2: memref<8x4xf32, #tpu.memory_space<vmem>>, %arg3: memref<4x128xf32, #tpu.memory_space<vmem>>, %arg4: memref<1x128xf32, #tpu.memory_space<vmem>>, %arg5: memref<2x128xf32, #tpu.memory_space<vmem>>, %arg6: memref<2x1xf32, #tpu.memory_space<vmem>>, %arg7: memref<2x8xf32, #tpu.memory_space<vmem>>) attributes {dimension_semantics = [#tpu.dimension_semantics<parallel>], iteration_bounds = array<i64: 1>, scalar_prefetch = 0 : i64, scratch_operands = 0 : i64, tpu.core_type = #tpu.core_type<tc>, window_params = [{transform_indices = @transform_0, window_bounds = array<i64: 1, 1>}, {transform_indices = @transform_1, window_bounds = array<i64: 8, 4>}, {pipeline_mode = #tpu.pipeline_mode<synchronous>, transform_indices = @transform_2, window_bounds = array<i64: 4, 128>}, {pipeline_mode = #tpu.pipeline_mode<synchronous>, transform_indices = @transform_3, window_bounds = array<i64: 1, 128>}, {pipeline_mode = #tpu.pipeline_mode<synchronous>, transform_indices = @transform_4, window_bounds = array<i64: 2, 128>}, {pipeline_mode = #tpu.pipeline_mode<synchronous>, transform_indices = @transform_5, window_bounds = array<i64: 2, 1>}, {transform_indices = @transform_6, window_bounds = array<i64: 2, 8>}]} {
    %c0 = arith.constant 0 : index
    %c0_0 = arith.constant 0 : index
    %0 = vector.load %arg2[%c0, %c0_0] : memref<8x4xf32, #tpu.memory_space<vmem>>, vector<8x4xf32>
    %c0_1 = arith.constant 0 : index
    %c0_2 = arith.constant 0 : index
    %1 = vector.load %arg3[%c0_1, %c0_2] : memref<4x128xf32, #tpu.memory_space<vmem>>, vector<4x128xf32>
    %cst = arith.constant dense<0.000000e+00> : vector<8x128xf32>
    %2 = tpu.matmul %0, %1, %cst {dimension_numbers = #tpu.dot_dimension_numbers<[1], [0], [0], [1], [0, 0, 1, 1], [], []>, precision = #tpu.contract_precision<fp32>} : vector<8x4xf32>, vector<4x128xf32>, vector<8x128xf32> -> vector<8x128xf32>
    %c0_3 = arith.constant 0 : index
    %c0_4 = arith.constant 0 : index
    %3 = vector.load %arg4[%c0_3, %c0_4] : memref<1x128xf32, #tpu.memory_space<vmem>>, vector<1x128xf32>
    %4 = vector.broadcast %3 : vector<1x128xf32> to vector<8x128xf32>
    %5 = arith.addf %2, %4 : vector<8x128xf32>
    %cst_5 = arith.constant 0.000000e+00 : f32
    %6 = vector.broadcast %cst_5 : f32 to vector<8x128xf32>
    %7 = arith.maximumf %5, %6 : vector<8x128xf32>
    %c0_6 = arith.constant 0 : index
    %c0_7 = arith.constant 0 : index
    %8 = vector.load %arg5[%c0_6, %c0_7] : memref<2x128xf32, #tpu.memory_space<vmem>>, vector<2x128xf32>
    %9 = tpu.transpose %7, [1, 0] : vector<8x128xf32> -> vector<128x8xf32>
    %cst_8 = arith.constant dense<0.000000e+00> : vector<2x8xf32>
    %10 = tpu.matmul %8, %9, %cst_8 {dimension_numbers = #tpu.dot_dimension_numbers<[1], [0], [0], [1], [0, 0, 1, 1], [], []>, precision = #tpu.contract_precision<fp32>} : vector<2x128xf32>, vector<128x8xf32>, vector<2x8xf32> -> vector<2x8xf32>
    %c0_9 = arith.constant 0 : index
    %c0_10 = arith.constant 0 : index
    %11 = vector.load %arg6[%c0_9, %c0_10] : memref<2x1xf32, #tpu.memory_space<vmem>>, vector<2x1xf32>
    %12 = vector.broadcast %11 : vector<2x1xf32> to vector<2x8xf32>
    %13 = arith.addf %10, %12 : vector<2x8xf32>
    %c0_11 = arith.constant 0 : index
    %c0_12 = arith.constant 0 : index
    %14 = memref.load %arg1[%c0_11, %c0_12] : memref<1x1xf32, #tpu.memory_space<smem>>
    %15 = vector.extract_strided_slice %13 {offsets = [0, 0], sizes = [1, 8], strides = [1, 1]} : vector<2x8xf32> to vector<1x8xf32>
    %16 = vector.extract_strided_slice %13 {offsets = [1, 0], sizes = [1, 8], strides = [1, 1]} : vector<2x8xf32> to vector<1x8xf32>
    %17 = math.tanh %15 : vector<1x8xf32>
    %18 = vector.broadcast %14 : f32 to vector<1x8xf32>
    %19 = arith.mulf %18, %17 : vector<1x8xf32>
    %c0_13 = arith.constant 0 : index
    %c0_14 = arith.constant 0 : index
    %20 = vector.load %arg7[%c0_13, %c0_14] : memref<2x8xf32, #tpu.memory_space<vmem>>, vector<1x8xf32>
    tpu.vector_store %arg7[%c0_13, %c0_14], %19 {strides = array<i32>} : memref<2x8xf32, #tpu.memory_space<vmem>>, vector<1x8xf32>,
    %cst_15 = arith.constant 0.000000e+00 : f32
    %21 = vector.broadcast %cst_15 : f32 to vector<1x8xf32>
    %22 = arith.maximumf %16, %21 : vector<1x8xf32>
    %23 = math.absf %16 : vector<1x8xf32>
    %cst_16 = arith.constant 0.000000e+00 : f32
    %24 = vector.broadcast %cst_16 : f32 to vector<1x8xf32>
    %25 = arith.subf %24, %23 : vector<1x8xf32>
    %26 = math.exp %25 : vector<1x8xf32>
    %cst_17 = arith.constant 1.000000e+00 : f32
    %27 = vector.broadcast %cst_17 : f32 to vector<1x8xf32>
    %28 = arith.addf %27, %26 : vector<1x8xf32>
    %29 = math.log %28 : vector<1x8xf32>
    %30 = arith.addf %22, %29 : vector<1x8xf32>
    %c1 = arith.constant 1 : index
    %c0_18 = arith.constant 0 : index
    %31 = vector.load %arg7[%c1, %c0_18] : memref<2x8xf32, #tpu.memory_space<vmem>>, vector<1x8xf32>
    tpu.vector_store %arg7[%c1, %c0_18], %30 {strides = array<i32>} : memref<2x8xf32, #tpu.memory_space<vmem>>, vector<1x8xf32>,
    return
  }
  func.func @transform_0(%arg0: i32) -> (i32, i32) {
    %c0_i32 = arith.constant 0 : i32
    %c0_i32_0 = arith.constant 0 : i32
    %c0_i32_1 = arith.constant 0 : i32
    return %c0_i32, %c0_i32_0 : i32, i32
  }
  func.func @transform_1(%arg0: i32) -> (i32, i32) {
    %c0_i32 = arith.constant 0 : i32
    %c0_i32_0 = arith.constant 0 : i32
    return %arg0, %c0_i32 : i32, i32
  }
  func.func @transform_2(%arg0: i32) -> (i32, i32) {
    %c0_i32 = arith.constant 0 : i32
    %c0_i32_0 = arith.constant 0 : i32
    %c0_i32_1 = arith.constant 0 : i32
    return %c0_i32, %c0_i32_0 : i32, i32
  }
  func.func @transform_3(%arg0: i32) -> (i32, i32) {
    %c0_i32 = arith.constant 0 : i32
    %c0_i32_0 = arith.constant 0 : i32
    %c0_i32_1 = arith.constant 0 : i32
    return %c0_i32, %c0_i32_0 : i32, i32
  }
  func.func @transform_4(%arg0: i32) -> (i32, i32) {
    %c0_i32 = arith.constant 0 : i32
    %c0_i32_0 = arith.constant 0 : i32
    %c0_i32_1 = arith.constant 0 : i32
    return %c0_i32, %c0_i32_0 : i32, i32
  }
  func.func @transform_5(%arg0: i32) -> (i32, i32) {
    %c0_i32 = arith.constant 0 : i32
    %c0_i32_0 = arith.constant 0 : i32
    %c0_i32_1 = arith.constant 0 : i32
    return %c0_i32, %c0_i32_0 : i32, i32
  }
  func.func @transform_6(%arg0: i32) -> (i32, i32) {
    %c0_i32 = arith.constant 0 : i32
    %c0_i32_0 = arith.constant 0 : i32
    return %c0_i32, %arg0 : i32, i32
  }
}

</mosaic_0001>

<llo_original>
// kernel: tpu_custom_call.1
$region0: #{tpu_custom_call.1}
  #allocation0 [shape = 'u32[]', space=smem, size = 0x4, offset = 0x4, fixed_abs, tag = 'smem constant byte address 0x4 - core index']
  #allocation1 [shape = 'u32[72,128]{1,0:T(1,128)}', space=vmem, size = 0x9000, scoped, tag = 'internal scratch']
  #allocation2 [shape = 'f32[1,1]{1,0:T(1,128)S(6)}', space=smem, size = 0x200, scoped, tag = 'scoped memory for tpu_custom_call.1']
  %s0 = inlined_call_operand.<no memory space> [shape: f32[1,1], index: 0, kind: input, shape index: {}]
  %s1 = inlined_call_operand.vmem [shape: f32[8,4], index: 1, kind: input, shape index: {}]
  %s2 = inlined_call_operand.vmem [shape: f32[4,128], index: 2, kind: input, shape index: {}]
  %s3 = inlined_call_operand.vmem [shape: f32[1,128], index: 3, kind: input, shape index: {}]
  %s4 = inlined_call_operand.vmem [shape: f32[2,128], index: 4, kind: input, shape index: {}]
  %s5 = inlined_call_operand.vmem [shape: f32[2,1], index: 5, kind: input, shape index: {}]
  %s6 = inlined_call_operand.hbm [shape: f32[2,8], index: 6, kind: output, shape index: {}]
  %s7 = sld [smem:[#allocation0]]
  $region34: #{tpu_custom_call.1} parent=0
    _
  %s9 = ssub.s32 1, %s7
  %s10 = scalar_select 0, %s9, %s7
  %11 = sst [smem:[#allocation2]] %s0
  $region1: #{tpu_custom_call.1} parent=0
    #allocation3 [shape = 'u8[1024]{0}', space=vmem, size = 0x400, scoped, tag = 'output window, operand 0, single buffered']
    #allocation4 [shape = 's32[1]{0}', space=sflag, size = 0x4, scoped, tag = 'scoped memory for tpu_custom_call.1']
    %12 = vsyncpa [#allocation4], 0
    // Predicated region
    $region2: #{tpu_custom_call.1} parent=1 // pred_check
      _
    $region3: #{tpu_custom_call.1} parent=1 // pred_check_branch
      %14 = sbr.rel (0) target = $region5
    $region4: #{tpu_custom_call.1} parent=1 // pred_region
      _
    $region5: #{tpu_custom_call.1} parent=1 // pred_fallthru
      _
    // Predicated region
    $region6: #{tpu_custom_call.1} parent=1 // pred_check
      _
    $region7: #{tpu_custom_call.1} parent=1 // pred_check_branch
      %16 = sbr.rel (0) target = $region9
    $region8: #{tpu_custom_call.1} parent=1 // pred_region
      _
    $region9: #{tpu_custom_call.1} parent=1 // pred_fallthru
      _
    // Predicated region
    $region10: #{tpu_custom_call.1} parent=1 // pred_check
      _
    $region11: #{tpu_custom_call.1} parent=1 // pred_check_branch
      %18 = sbr.rel (0) target = $region13
    $region12: #{tpu_custom_call.1} parent=1 // pred_region
      _
    $region13: #{tpu_custom_call.1} parent=1 // pred_fallthru
      _
    // Predicated region
    $region14: #{tpu_custom_call.1} parent=1 // pred_check
      _
    $region15: #{tpu_custom_call.1} parent=1 // pred_check_branch
      %20 = sbr.rel (0) target = $region17
    $region16: #{tpu_custom_call.1} parent=1 // pred_region
      _
    $region17: #{tpu_custom_call.1} parent=1 // pred_fallthru
      _
    // Predicated region
    $region18: #{tpu_custom_call.1} parent=1 // pred_check
      _
    $region19: #{tpu_custom_call.1} parent=1 // pred_check_branch
      %22 = sbr.rel (0) target = $region21
    $region20: #{tpu_custom_call.1} parent=1 // pred_region
      _
    $region21: #{tpu_custom_call.1} parent=1 // pred_fallthru
      _
    // Predicated region
    $region22: #{tpu_custom_call.1} parent=1 // pred_check
      _
    $region23: #{tpu_custom_call.1} parent=1 // pred_check_branch
      %24 = sbr.rel (0) target = $region25
    $region24: #{tpu_custom_call.1} parent=1 // pred_region
      _
    $region25: #{tpu_custom_call.1} parent=1 // pred_fallthru
      _
    %v25 = vld [vmem:[%s1] sm:$0xff]
    %v26 = vld [vmem:[%s2] sm:$0xf]
    %v27 = vld [vmem:[%s3] sm:$0x1]
    %v29 = vperm.slane %v27, 0
    %vm31 = vcmask 31744
    %v33 = vsel %vm31, %v25, 0
    %vm35 = vcmask 1043456
    %v37 = vsel %vm35, %v26, 0
    %39 = vmatpush.msra.mxu0 0.0
    %40 = vmatpush.msra.mxu0 0.0
    %41 = vmatpush.msra.mxu0 0.0
    %42 = vmatpush.msra.mxu0 0.0
    %43 = vmatpush.msra.mxu0 0.0
    %44 = vmatpush.msra.mxu0 0.0
    %45 = vmatpush.msra.mxu0 0.0
    %46 = vmatpush.msra.mxu0 0.0
    %47 = vmatpush.msra.mxu0 0.0
    %48 = vmatpush.msra.mxu0 0.0
    %49 = vmatpush.msra.mxu0 0.0
    %50 = vmatpush.msra.mxu0 0.0
    %51 = vmatpush.msra.mxu0 0.0
    %52 = vmatpush.msra.mxu0 0.0
    %53 = vmatpush.msra.mxu0 0.0
    %v54 = vand.u32 %v37, 4294901760
    %55 = vmatpush.msra.mxu0 %v54
    %v56 = vand.u32 %v33, 4294901760
    %v57 = vsub.f32 %v33, %v56
    %v58 = vand.u32 %v57, 4294901760
    %v59 = vsub.f32 %v57, %v58
    %v60 = vand.u32 %v59, 4294901760
    %61 = vmatmul.f32.gmra.mxu0 %v60
    %v62 = vpop.f32.mrf.mxu0
    %v63 = vadd.f32 %v29, %v62
    %64 = vdwg.mxu0
    %65 = vmatpush.msra.mxu0 0.0
    %66 = vmatpush.msra.mxu0 0.0
    %67 = vmatpush.msra.mxu0 0.0
    %68 = vmatpush.msra.mxu0 0.0
    %69 = vmatpush.msra.mxu0 0.0
    %70 = vmatpush.msra.mxu0 0.0
    %71 = vmatpush.msra.mxu0 0.0
    %72 = vmatpush.msra.mxu0 0.0
    %73 = vmatpush.msra.mxu0 0.0
    %74 = vmatpush.msra.mxu0 0.0
    %75 = vmatpush.msra.mxu0 0.0
    %76 = vmatpush.msra.mxu0 0.0
    %77 = vmatpush.msra.mxu0 0.0
    %78 = vmatpush.msra.mxu0 0.0
    %79 = vmatpush.msra.mxu0 0.0
    %v80 = vand.u32 %v37, 4294901760
    %v81 = vsub.f32 %v37, %v80
    %v82 = vand.u32 %v81, 4294901760
    %v83 = vsub.f32 %v81, %v82
    %v84 = vand.u32 %v83, 4294901760
    %85 = vmatpush.msra.mxu0 %v84
    %v86 = vand.u32 %v33, 4294901760
    %87 = vmatmul.f32.gmra.mxu0 %v86
    %v88 = vpop.f32.mrf.mxu0
    %v89 = vadd.f32 %v63, %v88
    %90 = vdwg.mxu0
    %91 = vmatpush.msra.mxu0 0.0
    %92 = vmatpush.msra.mxu0 0.0
    %93 = vmatpush.msra.mxu0 0.0
    %94 = vmatpush.msra.mxu0 0.0
    %95 = vmatpush.msra.mxu0 0.0
    %96 = vmatpush.msra.mxu0 0.0
    %97 = vmatpush.msra.mxu0 0.0
    %98 = vmatpush.msra.mxu0 0.0
    %99 = vmatpush.msra.mxu0 0.0
    %100 = vmatpush.msra.mxu0 0.0
    %101 = vmatpush.msra.mxu0 0.0
    %102 = vmatpush.msra.mxu0 0.0
    %103 = vmatpush.msra.mxu0 0.0
    %104 = vmatpush.msra.mxu0 0.0
    %105 = vmatpush.msra.mxu0 0.0
    %v106 = vand.u32 %v37, 4294901760
    %v107 = vsub.f32 %v37, %v106
    %108 = vmatpush.msra.mxu0 %v107
    %v109 = vand.u32 %v33, 4294901760
    %v110 = vsub.f32 %v33, %v109
    %111 = vmatmul.f32.gmra.mxu0 %v110
    %v112 = vpop.f32.mrf.mxu0
    %v113 = vadd.f32 %v89, %v112
    %114 = vdwg.mxu0
    %115 = vmatpush.msra.mxu0 0.0
    %116 = vmatpush.msra.mxu0 0.0
    %117 = vmatpush.msra.mxu0 0.0
    %118 = vmatpush.msra.mxu0 0.0
    %119 = vmatpush.msra.mxu0 0.0
    %120 = vmatpush.msra.mxu0 0.0
    %121 = vmatpush.msra.mxu0 0.0
    %122 = vmatpush.msra.mxu0 0.0
    %123 = vmatpush.msra.mxu0 0.0
    %124 = vmatpush.msra.mxu0 0.0
    %125 = vmatpush.msra.mxu0 0.0
    %126 = vmatpush.msra.mxu0 0.0
    %127 = vmatpush.msra.mxu0 0.0
    %128 = vmatpush.msra.mxu0 0.0
    %129 = vmatpush.msra.mxu0 0.0
    %v130 = vand.u32 %v37, 4294901760
    %131 = vmatpush.msra.mxu0 %v130
    %v132 = vand.u32 %v33, 4294901760
    %v133 = vsub.f32 %v33, %v132
    %v134 = vand.u32 %v133, 4294901760
    %135 = vmatmul.f32.gmra.mxu0 %v134
    %v136 = vpop.f32.mrf.mxu0
    %v137 = vadd.f32 %v113, %v136
    %138 = vdwg.mxu0
    %139 = vmatpush.msra.mxu0 0.0
    %140 = vmatpush.msra.mxu0 0.0
    %141 = vmatpush.msra.mxu0 0.0
    %142 = vmatpush.msra.mxu0 0.0
    %143 = vmatpush.msra.mxu0 0.0
    %144 = vmatpush.msra.mxu0 0.0
    %145 = vmatpush.msra.mxu0 0.0
    %146 = vmatpush.msra.mxu0 0.0
    %147 = vmatpush.msra.mxu0 0.0
    %148 = vmatpush.msra.mxu0 0.0
    %149 = vmatpush.msra.mxu0 0.0
    %150 = vmatpush.msra.mxu0 0.0
    %151 = vmatpush.msra.mxu0 0.0
    %152 = vmatpush.msra.mxu0 0.0
    %153 = vmatpush.msra.mxu0 0.0
    %v154 = vand.u32 %v37, 4294901760
    %v155 = vsub.f32 %v37, %v154
    %v156 = vand.u32 %v155, 4294901760
    %157 = vmatpush.msra.mxu0 %v156
    %v158 = vand.u32 %v33, 4294901760
    %159 = vmatmul.f32.gmra.mxu0 %v158
    %v160 = vpop.f32.mrf.mxu0
    %v161 = vadd.f32 %v137, %v160
    %162 = vdwg.mxu0
    %163 = vmatpush.msra.mxu0 0.0
    %164 = vmatpush.msra.mxu0 0.0
    %165 = vmatpush.msra.mxu0 0.0
    %166 = vmatpush.msra.mxu0 0.0
    %167 = vmatpush.msra.mxu0 0.0
    %168 = vmatpush.msra.mxu0 0.0
    %169 = vmatpush.msra.mxu0 0.0
    %170 = vmatpush.msra.mxu0 0.0
    %171 = vmatpush.msra.mxu0 0.0
    %172 = vmatpush.msra.mxu0 0.0
    %173 = vmatpush.msra.mxu0 0.0
    %174 = vmatpush.msra.mxu0 0.0
    %175 = vmatpush.msra.mxu0 0.0
    %176 = vmatpush.msra.mxu0 0.0
    %177 = vmatpush.msra.mxu0 0.0
    %v178 = vand.u32 %v37, 4294901760
    %179 = vmatpush.msra.mxu0 %v178
    %v180 = vand.u32 %v33, 4294901760
    %181 = vmatmul.f32.gmra.mxu0 %v180
    %v182 = vpop.f32.mrf.mxu0
    %v183 = vadd.f32 %v161, %v182
    %184 = vdwg.mxu0
    %v185 = vmax.f32 %v183, 0.0
    %v186 = vld [vmem:[%s4] sm:$0x3]
    %v187 = vld [vmem:[%s5] sm:$0x3]
    %189 = vset.pattern.permute.xlu0 0
    %190 = vperm.xlu0 %189, %v187
    %v191 = vpop.permute.xlu0 %190
    %193 = vmatpush.xpose.msra.mxu0 0.0
    %194 = vmatpush.xpose.msra.mxu0 0.0
    %195 = vmatpush.xpose.msra.mxu0 0.0
    %196 = vmatpush.xpose.msra.mxu0 0.0
    %197 = vmatpush.xpose.msra.mxu0 0.0
    %198 = vmatpush.xpose.msra.mxu0 0.0
    %199 = vmatpush.xpose.msra.mxu0 0.0
    %200 = vmatpush.xpose.msra.mxu0 0.0
    %201 = vmatpush.xpose.msra.mxu0 0.0
    %202 = vmatpush.xpose.msra.mxu0 0.0
    %203 = vmatpush.xpose.msra.mxu0 0.0
    %204 = vmatpush.xpose.msra.mxu0 0.0
    %205 = vmatpush.xpose.msra.mxu0 0.0
    %206 = vmatpush.xpose.msra.mxu0 0.0
    %207 = vmatpush.xpose.msra.mxu0 0.0
    %v208 = vand.u32 %v185, 4294901760
    %209 = vmatpush.xpose.msra.mxu0 %v208
    %v210 = vand.u32 %v186, 4294901760
    %v211 = vsub.f32 %v186, %v210
    %v212 = vand.u32 %v211, 4294901760
    %v213 = vsub.f32 %v211, %v212
    %v214 = vand.u32 %v213, 4294901760
    %215 = vmatmul.f32.gmra.mxu0 %v214
    %v216 = vpop.f32.mrf.mxu0
    %v217 = vadd.f32 %v191, %v216
    %218 = vdwg.mxu0
    %219 = vmatpush.xpose.msra.mxu0 0.0
    %220 = vmatpush.xpose.msra.mxu0 0.0
    %221 = vmatpush.xpose.msra.mxu0 0.0
    %222 = vmatpush.xpose.msra.mxu0 0.0
    %223 = vmatpush.xpose.msra.mxu0 0.0
    %224 = vmatpush.xpose.msra.mxu0 0.0
    %225 = vmatpush.xpose.msra.mxu0 0.0
    %226 = vmatpush.xpose.msra.mxu0 0.0
    %227 = vmatpush.xpose.msra.mxu0 0.0
    %228 = vmatpush.xpose.msra.mxu0 0.0
    %229 = vmatpush.xpose.msra.mxu0 0.0
    %230 = vmatpush.xpose.msra.mxu0 0.0
    %231 = vmatpush.xpose.msra.mxu0 0.0
    %232 = vmatpush.xpose.msra.mxu0 0.0
    %233 = vmatpush.xpose.msra.mxu0 0.0
    %v234 = vand.u32 %v185, 4294901760
    %v235 = vsub.f32 %v185, %v234
    %v236 = vand.u32 %v235, 4294901760
    %v237 = vsub.f32 %v235, %v236
    %v238 = vand.u32 %v237, 4294901760
    %239 = vmatpush.xpose.msra.mxu0 %v238
    %v240 = vand.u32 %v186, 4294901760
    %241 = vmatmul.f32.gmra.mxu0 %v240
    %v242 = vpop.f32.mrf.mxu0
    %v243 = vadd.f32 %v217, %v242
    %244 = vdwg.mxu0
    %245 = vmatpush.xpose.msra.mxu0 0.0
    %246 = vmatpush.xpose.msra.mxu0 0.0
    %247 = vmatpush.xpose.msra.mxu0 0.0
    %248 = vmatpush.xpose.msra.mxu0 0.0
    %249 = vmatpush.xpose.msra.mxu0 0.0
    %250 = vmatpush.xpose.msra.mxu0 0.0
    %251 = vmatpush.xpose.msra.mxu0 0.0
    %252 = vmatpush.xpose.msra.mxu0 0.0
    %253 = vmatpush.xpose.msra.mxu0 0.0
    %254 = vmatpush.xpose.msra.mxu0 0.0
    %255 = vmatpush.xpose.msra.mxu0 0.0
    %256 = vmatpush.xpose.msra.mxu0 0.0
    %257 = vmatpush.xpose.msra.mxu0 0.0
    %258 = vmatpush.xpose.msra.mxu0 0.0
    %259 = vmatpush.xpose.msra.mxu0 0.0
    %v260 = vand.u32 %v185, 4294901760
    %v261 = vsub.f32 %v185, %v260
    %262 = vmatpush.xpose.msra.mxu0 %v261
    %v263 = vand.u32 %v186, 4294901760
    %v264 = vsub.f32 %v186, %v263
    %265 = vmatmul.f32.gmra.mxu0 %v264
    %v266 = vpop.f32.mrf.mxu0
    %v267 = vadd.f32 %v243, %v266
    %268 = vdwg.mxu0
    %269 = vmatpush.xpose.msra.mxu0 0.0
    %270 = vmatpush.xpose.msra.mxu0 0.0
    %271 = vmatpush.xpose.msra.mxu0 0.0
    %272 = vmatpush.xpose.msra.mxu0 0.0
    %273 = vmatpush.xpose.msra.mxu0 0.0
    %274 = vmatpush.xpose.msra.mxu0 0.0
    %275 = vmatpush.xpose.msra.mxu0 0.0
    %276 = vmatpush.xpose.msra.mxu0 0.0
    %277 = vmatpush.xpose.msra.mxu0 0.0
    %278 = vmatpush.xpose.msra.mxu0 0.0
    %279 = vmatpush.xpose.msra.mxu0 0.0
    %280 = vmatpush.xpose.msra.mxu0 0.0
    %281 = vmatpush.xpose.msra.mxu0 0.0
    %282 = vmatpush.xpose.msra.mxu0 0.0
    %283 = vmatpush.xpose.msra.mxu0 0.0
    %v284 = vand.u32 %v185, 4294901760
    %285 = vmatpush.xpose.msra.mxu0 %v284
    %v286 = vand.u32 %v186, 4294901760
    %v287 = vsub.f32 %v186, %v286
    %v288 = vand.u32 %v287, 4294901760
    %289 = vmatmul.f32.gmra.mxu0 %v288
    %v290 = vpop.f32.mrf.mxu0
    %v291 = vadd.f32 %v267, %v290
    %292 = vdwg.mxu0
    %293 = vmatpush.xpose.msra.mxu0 0.0
    %294 = vmatpush.xpose.msra.mxu0 0.0
    %295 = vmatpush.xpose.msra.mxu0 0.0
    %296 = vmatpush.xpose.msra.mxu0 0.0
    %297 = vmatpush.xpose.msra.mxu0 0.0
    %298 = vmatpush.xpose.msra.mxu0 0.0
    %299 = vmatpush.xpose.msra.mxu0 0.0
    %300 = vmatpush.xpose.msra.mxu0 0.0
    %301 = vmatpush.xpose.msra.mxu0 0.0
    %302 = vmatpush.xpose.msra.mxu0 0.0
    %303 = vmatpush.xpose.msra.mxu0 0.0
    %304 = vmatpush.xpose.msra.mxu0 0.0
    %305 = vmatpush.xpose.msra.mxu0 0.0
    %306 = vmatpush.xpose.msra.mxu0 0.0
    %307 = vmatpush.xpose.msra.mxu0 0.0
    %v308 = vand.u32 %v185, 4294901760
    %v309 = vsub.f32 %v185, %v308
    %v310 = vand.u32 %v309, 4294901760
    %311 = vmatpush.xpose.msra.mxu0 %v310
    %v312 = vand.u32 %v186, 4294901760
    %313 = vmatmul.f32.gmra.mxu0 %v312
    %v314 = vpop.f32.mrf.mxu0
    %v315 = vadd.f32 %v291, %v314
    %316 = vdwg.mxu0
    %317 = vmatpush.xpose.msra.mxu0 0.0
    %318 = vmatpush.xpose.msra.mxu0 0.0
    %319 = vmatpush.xpose.msra.mxu0 0.0
    %320 = vmatpush.xpose.msra.mxu0 0.0
    %321 = vmatpush.xpose.msra.mxu0 0.0
    %322 = vmatpush.xpose.msra.mxu0 0.0
    %323 = vmatpush.xpose.msra.mxu0 0.0
    %324 = vmatpush.xpose.msra.mxu0 0.0
    %325 = vmatpush.xpose.msra.mxu0 0.0
    %326 = vmatpush.xpose.msra.mxu0 0.0
    %327 = vmatpush.xpose.msra.mxu0 0.0
    %328 = vmatpush.xpose.msra.mxu0 0.0
    %329 = vmatpush.xpose.msra.mxu0 0.0
    %330 = vmatpush.xpose.msra.mxu0 0.0
    %331 = vmatpush.xpose.msra.mxu0 0.0
    %v332 = vand.u32 %v185, 4294901760
    %333 = vmatpush.xpose.msra.mxu0 %v332
    %v334 = vand.u32 %v186, 4294901760
    %335 = vmatmul.f32.gmra.mxu0 %v334
    %v336 = vpop.f32.mrf.mxu0
    %v337 = vadd.f32 %v315, %v336
    %338 = vdwg.mxu0
    %s339 = sld [smem:[#allocation2]]
    %v340 = vtanh.pop %v337
    %v341 = vstv %s339
    %v342 = vmul.f32 %v341, %v340
    %vm343 = vcmask 57344
    %344 = vst.msk [vmem:[#allocation3] sm:$0x1] %vm343, %v342
    %v345 = vmax.f32 %v337, 0.0
    %v346 = vand.u32 2147483647, %v337
    %v347 = vsub.f32 0.0, %v346
    %v348 = vmul.f32 %v347, 1.442695
    %v349 = vpow.pop %v348
    %v350 = vadd.f32 %v349, 1.0
    %v351 = vlog2.pop %v350
    %v352 = vmul.f32 %v351, 0.6931472
    %v353 = vadd.f32 %v345, %v352
    %vm354 = vcmask 58369
    %355 = vst.msk [vmem:[#allocation3] sm:$0x2] %vm354, %v353
    // Predicated region
    $region26: #{tpu_custom_call.1} parent=1 // pred_check
      _
    $region27: #{tpu_custom_call.1} parent=1 // pred_check_branch
      %357 = sbr.rel (0) target = $region29
    $region28: #{tpu_custom_call.1} parent=1 // pred_region
      %359 = vsyncadd [#allocation4], 0
      %s361 = sshll.u32 [#allocation3], 4
      %s362 = int_to_ptr.vmem [resolvable:$true] %s361
      %s363 = sshll.u32 %s6, 4
      %s364 = int_to_ptr.hbm [resolvable:$true] %s363
      %366 = dma.vmem_to_hbm [thread:$0]  %s362, 32, %s364, [#allocation4]
    $region29: #{tpu_custom_call.1} parent=1 // pred_fallthru
      _
    // Predicated region
    $region30: #{tpu_custom_call.1} parent=1 // pred_check
      _
    $region31: #{tpu_custom_call.1} parent=1 // pred_check_branch
      %368 = sbr.rel (0) target = $region33
    $region32: #{tpu_custom_call.1} parent=1 // pred_region
      %370 = dma.done [#allocation4], 32
    $region33: #{tpu_custom_call.1} parent=1 // pred_fallthru
      _
    %371 = vsyncpa [#allocation4], 1

</llo_original>
